<compile_context>
chip_gen: v5e
topology: v5e:2x2
jax: 0.10.0
libtpu: 0.0.40
codegen_flags: <defaults>
</compile_context>

<pallas_src>
import functools
import math

import jax
import jax.numpy as jnp
from jax.experimental import pallas as pl
from jax.experimental.pallas import tpu as pltpu

_LANE = 128
_BN_EPS = 1e-5


def _round_up(n, m):
    return ((n + m - 1) // m) * m


def _fused_mlp_kernel(*refs, n_layers):
    """Whole MLP in one kernel body: (Linear -> ReLU -> BN) x (L-1), Linear -> ReLU."""
    x_ref = refs[0]
    o_ref = refs[-1]
    layer_refs = refs[1:-1]  # 4 refs per hidden layer (W,b,gamma,beta), 2 for the last (W,b)

    y = x_ref[...]                                   # (B, 128k) f32, stays in vregs/VMEM
    inv_b = 1.0 / y.shape[0]
    idx = 0
    for ii in range(n_layers):
        last = ii == n_layers - 1
        if last:
            w_ref, b_ref = layer_refs[idx], layer_refs[idx + 1]
            idx += 2
        else:
            w_ref, b_ref, g_ref, beta_ref = layer_refs[idx: idx + 4]
            idx += 4

        y = jnp.dot(y, w_ref[...], preferred_element_type=jnp.float32) + b_ref[...]
        y = jnp.maximum(y, 0.0)                      # ReLU

        if not last:
            # BatchNorm1d (training mode), two-pass batch statistics, folded affine.
            mean = jnp.sum(y, axis=0, keepdims=True) * inv_b           # (1, F)
            centered = y - mean
            var = jnp.sum(centered * centered, axis=0, keepdims=True) * inv_b
            scale = g_ref[...] * jax.lax.rsqrt(var + _BN_EPS)          # (1, F)
            shift = beta_ref[...] - mean * scale                       # (1, F)
            y = y * scale + shift                                      # 2 full-tile passes

    o_ref[...] = y.astype(o_ref.dtype)


def prepare_padded_params(params):
    """One-time lane-padding of parameters. Do NOT call per forward."""
    n_layers = len(params)
    fin = params[0][0].shape[0]
    fouts = [w.shape[1] for (w, _, _, _) in params]
    dims = [_round_up(fin, _LANE)] + [_round_up(f, _LANE) for f in fouts]

    padded = []
    for ii, (w, b, g, be) in enumerate(params):
        din, dout = dims[ii], dims[ii + 1]
        pw = jnp.pad(w, ((0, din - w.shape[0]), (0, dout - w.shape[1])))
        pb = jnp.pad(b, ((0, 0), (0, dout - b.shape[1])))
        if ii < n_layers - 1:
            pg = jnp.pad(g, ((0, 0), (0, dout - g.shape[1])))
            pbe = jnp.pad(be, ((0, 0), (0, dout - be.shape[1])))
            padded.append((pw, pb, pg, pbe))
        else:
            padded.append((pw, pb))          # no BN after the final Linear
    return tuple(padded), fouts[-1]


@functools.partial(jax.jit, static_argnames=("out_size",))
def _fused_mlp_forward(x, padded_params, out_size):
    B, fin = x.shape
    n_layers = len(padded_params)
    din0 = padded_params[0][0].shape[0]
    dout_last = padded_params[-1][0].shape[1]

    # Only the (small) activation tensor is padded per call; weights are pre-padded.
    inputs = [jnp.pad(x, ((0, 0), (0, din0 - fin))).astype(jnp.float32)]
    for layer in padded_params:
        inputs.extend(layer)

    # Right-sized VMEM limit: actual footprint of all resident buffers + headroom.
    total_bytes = sum(math.prod(a.shape) * a.dtype.itemsize for a in inputs)
    total_bytes += B * dout_last * 4                                  # output tile
    vmem_limit = max(2 << 20, _round_up(2 * total_bytes, 1 << 20))

    full = lambda shape: pl.BlockSpec(shape, lambda: tuple(0 for _ in shape))
    kernel = functools.partial(_fused_mlp_kernel, n_layers=n_layers)

    out_p = pl.pallas_call(
        kernel,
        out_shape=jax.ShapeDtypeStruct((B, dout_last), jnp.float32),
        in_specs=[full(a.shape) for a in inputs],
        out_specs=full((B, dout_last)),
        compiler_params=pltpu.CompilerParams(vmem_limit_bytes=vmem_limit),
    )(*inputs)
    # Slice to the true output width inside the jit (fused with the call epilogue).
    return out_p[:, :out_size]


def base_mlp_forward(x, padded_params, out_size):
    return _fused_mlp_forward(x, padded_params, out_size)


def init_params(key, layer_sizes):
    """Deterministic parameter init mirroring the PyTorch module's shapes."""
    params = []
    n_layers = len(layer_sizes) - 1
    for ii in range(n_layers):
        fin, fout = layer_sizes[ii], layer_sizes[ii + 1]
        key, kw, kb, kg, kbe = jax.random.split(key, 5)
        bound = 1.0 / jnp.sqrt(fin)
        w = jax.random.uniform(kw, (fin, fout), jnp.float32, -bound, bound)
        b = jax.random.uniform(kb, (1, fout), jnp.float32, -bound, bound)
        # BN affine params (PyTorch defaults gamma=1, beta=0; perturbed so the
        # BN path is actually exercised). Last layer's are unused (no final BN).
        gamma = 1.0 + 0.1 * jax.random.normal(kg, (1, fout), jnp.float32)
        beta = 0.1 * jax.random.normal(kbe, (1, fout), jnp.float32)
        params.append((w, b, gamma, beta))
    return params


def base_mlp_reference(x, params):
    """Pure-JAX reference for correctness checking."""
    n_layers = len(params)
    for ii, (w, b, gamma, beta) in enumerate(params):
        y = x @ w + b
        y = jnp.maximum(y, 0.0)
        if ii < n_layers - 1:
            mean = jnp.mean(y, axis=0, keepdims=True)
            var = jnp.mean((y - mean) ** 2, axis=0, keepdims=True)
            y = (y - mean) / jnp.sqrt(var + _BN_EPS)
            y = y * gamma + beta
        x = y
    return x


if __name__ == "__main__":
    # BaseMLP(hidden_sizes=[32, 64], in_size=16, out_size=8), batch of 16.
    in_size, hidden_sizes, out_size = 16, [32, 64], 8
    layer_sizes = [in_size] + hidden_sizes + [out_size]
    batch = 16

    key = jax.random.PRNGKey(0)
    key_x, key_p = jax.random.split(key)
    x = jax.random.normal(key_x, (batch, in_size), jnp.float32)
    params = init_params(key_p, layer_sizes)

    # One-time prep (outside the per-call path): pad parameters to 128-lane tiles.
    padded_params, true_out = prepare_padded_params(params)

    out = base_mlp_forward(x, padded_params, true_out)
    out = jax.block_until_ready(out)

    ref = base_mlp_reference(x, params)
    assert out.shape == (batch, out_size)
    assert jnp.allclose(out, ref, atol=1e-4, rtol=1e-4), "mismatch vs JAX reference"

    print("KERNEL_OK")
</pallas_src>

<mosaic_0001>
module attributes {stable_mosaic.version = 11 : i64} {
  func.func @_fused_mlp_kernel(%arg0: memref<16x128xf32, #tpu.memory_space<vmem>>, %arg1: memref<128x128xf32, #tpu.memory_space<vmem>>, %arg2: memref<1x128xf32, #tpu.memory_space<vmem>>, %arg3: memref<1x128xf32, #tpu.memory_space<vmem>>, %arg4: memref<1x128xf32, #tpu.memory_space<vmem>>, %arg5: memref<128x128xf32, #tpu.memory_space<vmem>>, %arg6: memref<1x128xf32, #tpu.memory_space<vmem>>, %arg7: memref<1x128xf32, #tpu.memory_space<vmem>>, %arg8: memref<1x128xf32, #tpu.memory_space<vmem>>, %arg9: memref<128x128xf32, #tpu.memory_space<vmem>>, %arg10: memref<1x128xf32, #tpu.memory_space<vmem>>, %arg11: memref<16x128xf32, #tpu.memory_space<vmem>>) attributes {dimension_semantics = [], scalar_prefetch = 0 : i64, scratch_operands = 0 : i64, tpu.core_type = #tpu.core_type<tc>} {
    %c0 = arith.constant 0 : index
    %c0_0 = arith.constant 0 : index
    %0 = vector.load %arg0[%c0, %c0_0] : memref<16x128xf32, #tpu.memory_space<vmem>>, vector<16x128xf32>
    %c0_1 = arith.constant 0 : index
    %c0_2 = arith.constant 0 : index
    %1 = vector.load %arg1[%c0_1, %c0_2] : memref<128x128xf32, #tpu.memory_space<vmem>>, vector<128x128xf32>
    %cst = arith.constant dense<0.000000e+00> : vector<16x128xf32>
    %2 = tpu.matmul %0, %1, %cst {dimension_numbers = #tpu.dot_dimension_numbers<[1], [0], [0], [1], [0, 0, 1, 1], [], []>} : vector<16x128xf32>, vector<128x128xf32>, vector<16x128xf32> -> vector<16x128xf32>
    %c0_3 = arith.constant 0 : index
    %c0_4 = arith.constant 0 : index
    %3 = vector.load %arg2[%c0_3, %c0_4] : memref<1x128xf32, #tpu.memory_space<vmem>>, vector<1x128xf32>
    %4 = vector.broadcast %3 : vector<1x128xf32> to vector<16x128xf32>
    %5 = arith.addf %2, %4 : vector<16x128xf32>
    %cst_5 = arith.constant 0.000000e+00 : f32
    %6 = vector.broadcast %cst_5 : f32 to vector<16x128xf32>
    %7 = arith.maximumf %5, %6 : vector<16x128xf32>
    %cst_6 = arith.constant dense<0.000000e+00> : vector<128xf32>
    %8 = vector.multi_reduction <add>, %7, %cst_6 [0] : vector<16x128xf32> to vector<128xf32>
    %9 = vector.shape_cast %8 : vector<128xf32> to vector<1x128xf32>
    %cst_7 = arith.constant 6.250000e-02 : f32
    %10 = vector.broadcast %cst_7 : f32 to vector<1x128xf32>
    %11 = arith.mulf %9, %10 : vector<1x128xf32>
    %12 = vector.broadcast %11 : vector<1x128xf32> to vector<16x128xf32>
    %13 = arith.subf %7, %12 : vector<16x128xf32>
    %14 = arith.mulf %13, %13 : vector<16x128xf32>
    %cst_8 = arith.constant dense<0.000000e+00> : vector<128xf32>
    %15 = vector.multi_reduction <add>, %14, %cst_8 [0] : vector<16x128xf32> to vector<128xf32>
    %16 = vector.shape_cast %15 : vector<128xf32> to vector<1x128xf32>
    %cst_9 = arith.constant 6.250000e-02 : f32
    %17 = vector.broadcast %cst_9 : f32 to vector<1x128xf32>
    %18 = arith.mulf %16, %17 : vector<1x128xf32>
    %c0_10 = arith.constant 0 : index
    %c0_11 = arith.constant 0 : index
    %19 = vector.load %arg3[%c0_10, %c0_11] : memref<1x128xf32, #tpu.memory_space<vmem>>, vector<1x128xf32>
    %cst_12 = arith.constant 9.99999974E-6 : f32
    %20 = vector.broadcast %cst_12 : f32 to vector<1x128xf32>
    %21 = arith.addf %18, %20 : vector<1x128xf32>
    %22 = math.rsqrt %21 : vector<1x128xf32>
    %23 = arith.mulf %19, %22 : vector<1x128xf32>
    %c0_13 = arith.constant 0 : index
    %c0_14 = arith.constant 0 : index
    %24 = vector.load %arg4[%c0_13, %c0_14] : memref<1x128xf32, #tpu.memory_space<vmem>>, vector<1x128xf32>
    %25 = arith.mulf %11, %23 : vector<1x128xf32>
    %26 = arith.subf %24, %25 : vector<1x128xf32>
    %27 = vector.broadcast %23 : vector<1x128xf32> to vector<16x128xf32>
    %28 = arith.mulf %7, %27 : vector<16x128xf32>
    %29 = vector.broadcast %26 : vector<1x128xf32> to vector<16x128xf32>
    %30 = arith.addf %28, %29 : vector<16x128xf32>
    %c0_15 = arith.constant 0 : index
    %c0_16 = arith.constant 0 : index
    %31 = vector.load %arg5[%c0_15, %c0_16] : memref<128x128xf32, #tpu.memory_space<vmem>>, vector<128x128xf32>
    %cst_17 = arith.constant dense<0.000000e+00> : vector<16x128xf32>
    %32 = tpu.matmul %30, %31, %cst_17 {dimension_numbers = #tpu.dot_dimension_numbers<[1], [0], [0], [1], [0, 0, 1, 1], [], []>} : vector<16x128xf32>, vector<128x128xf32>, vector<16x128xf32> -> vector<16x128xf32>
    %c0_18 = arith.constant 0 : index
    %c0_19 = arith.constant 0 : index
    %33 = vector.load %arg6[%c0_18, %c0_19] : memref<1x128xf32, #tpu.memory_space<vmem>>, vector<1x128xf32>
    %34 = vector.broadcast %33 : vector<1x128xf32> to vector<16x128xf32>
    %35 = arith.addf %32, %34 : vector<16x128xf32>
    %cst_20 = arith.constant 0.000000e+00 : f32
    %36 = vector.broadcast %cst_20 : f32 to vector<16x128xf32>
    %37 = arith.maximumf %35, %36 : vector<16x128xf32>
    %cst_21 = arith.constant dense<0.000000e+00> : vector<128xf32>
    %38 = vector.multi_reduction <add>, %37, %cst_21 [0] : vector<16x128xf32> to vector<128xf32>
    %39 = vector.shape_cast %38 : vector<128xf32> to vector<1x128xf32>
    %cst_22 = arith.constant 6.250000e-02 : f32
    %40 = vector.broadcast %cst_22 : f32 to vector<1x128xf32>
    %41 = arith.mulf %39, %40 : vector<1x128xf32>
    %42 = vector.broadcast %41 : vector<1x128xf32> to vector<16x128xf32>
    %43 = arith.subf %37, %42 : vector<16x128xf32>
    %44 = arith.mulf %43, %43 : vector<16x128xf32>
    %cst_23 = arith.constant dense<0.000000e+00> : vector<128xf32>
    %45 = vector.multi_reduction <add>, %44, %cst_23 [0] : vector<16x128xf32> to vector<128xf32>
    %46 = vector.shape_cast %45 : vector<128xf32> to vector<1x128xf32>
    %cst_24 = arith.constant 6.250000e-02 : f32
    %47 = vector.broadcast %cst_24 : f32 to vector<1x128xf32>
    %48 = arith.mulf %46, %47 : vector<1x128xf32>
    %c0_25 = arith.constant 0 : index
    %c0_26 = arith.constant 0 : index
    %49 = vector.load %arg7[%c0_25, %c0_26] : memref<1x128xf32, #tpu.memory_space<vmem>>, vector<1x128xf32>
    %cst_27 = arith.constant 9.99999974E-6 : f32
    %50 = vector.broadcast %cst_27 : f32 to vector<1x128xf32>
    %51 = arith.addf %48, %50 : vector<1x128xf32>
    %52 = math.rsqrt %51 : vector<1x128xf32>
    %53 = arith.mulf %49, %52 : vector<1x128xf32>
    %c0_28 = arith.constant 0 : index
    %c0_29 = arith.constant 0 : index
    %54 = vector.load %arg8[%c0_28, %c0_29] : memref<1x128xf32, #tpu.memory_space<vmem>>, vector<1x128xf32>
    %55 = arith.mulf %41, %53 : vector<1x128xf32>
    %56 = arith.subf %54, %55 : vector<1x128xf32>
    %57 = vector.broadcast %53 : vector<1x128xf32> to vector<16x128xf32>
    %58 = arith.mulf %37, %57 : vector<16x128xf32>
    %59 = vector.broadcast %56 : vector<1x128xf32> to vector<16x128xf32>
    %60 = arith.addf %58, %59 : vector<16x128xf32>
    %c0_30 = arith.constant 0 : index
    %c0_31 = arith.constant 0 : index
    %61 = vector.load %arg9[%c0_30, %c0_31] : memref<128x128xf32, #tpu.memory_space<vmem>>, vector<128x128xf32>
    %cst_32 = arith.constant dense<0.000000e+00> : vector<16x128xf32>
    %62 = tpu.matmul %60, %61, %cst_32 {dimension_numbers = #tpu.dot_dimension_numbers<[1], [0], [0], [1], [0, 0, 1, 1], [], []>} : vector<16x128xf32>, vector<128x128xf32>, vector<16x128xf32> -> vector<16x128xf32>
    %c0_33 = arith.constant 0 : index
    %c0_34 = arith.constant 0 : index
    %63 = vector.load %arg10[%c0_33, %c0_34] : memref<1x128xf32, #tpu.memory_space<vmem>>, vector<1x128xf32>
    %64 = vector.broadcast %63 : vector<1x128xf32> to vector<16x128xf32>
    %65 = arith.addf %62, %64 : vector<16x128xf32>
    %cst_35 = arith.constant 0.000000e+00 : f32
    %66 = vector.broadcast %cst_35 : f32 to vector<16x128xf32>
    %67 = arith.maximumf %65, %66 : vector<16x128xf32>
    %c0_36 = arith.constant 0 : index
    %c0_37 = arith.constant 0 : index
    %68 = vector.load %arg11[%c0_36, %c0_37] : memref<16x128xf32, #tpu.memory_space<vmem>>, vector<16x128xf32>
    tpu.vector_store %arg11[%c0_36, %c0_37], %67 {strides = array<i32>} : memref<16x128xf32, #tpu.memory_space<vmem>>, vector<16x128xf32>,
    return
  }
}

</mosaic_0001>

<llo_original>
// kernel: _fused_mlp_forward.1
$region0: #{_fused_mlp_forward.1}
  #allocation0 [shape = 'u32[]', space=smem, size = 0x4, offset = 0x4, fixed_abs, tag = 'smem constant byte address 0x4 - core index']
  #allocation1 [shape = 'u32[72,128]{1,0:T(1,128)}', space=vmem, size = 0x9000, scoped, tag = 'internal scratch']
  %s0 = inlined_call_operand.vmem [shape: f32[16,128], index: 0, kind: input, shape index: {}]
  %s1 = inlined_call_operand.hbm [shape: f32[128,128], index: 1, kind: input, shape index: {}]
  %s2 = inlined_call_operand.vmem [shape: f32[1,128], index: 2, kind: input, shape index: {}]
  %s3 = inlined_call_operand.vmem [shape: f32[1,128], index: 3, kind: input, shape index: {}]
  %s4 = inlined_call_operand.vmem [shape: f32[1,128], index: 4, kind: input, shape index: {}]
  %s5 = inlined_call_operand.hbm [shape: f32[128,128], index: 5, kind: input, shape index: {}]
  %s6 = inlined_call_operand.vmem [shape: f32[1,128], index: 6, kind: input, shape index: {}]
  %s7 = inlined_call_operand.vmem [shape: f32[1,128], index: 7, kind: input, shape index: {}]
  %s8 = inlined_call_operand.vmem [shape: f32[1,128], index: 8, kind: input, shape index: {}]
  %s9 = inlined_call_operand.hbm [shape: f32[128,128], index: 9, kind: input, shape index: {}]
  %s10 = inlined_call_operand.vmem [shape: f32[1,128], index: 10, kind: input, shape index: {}]
  %s11 = inlined_call_operand.vmem [shape: f32[16,128], index: 11, kind: output, shape index: {}]
  %s12 = sld [smem:[#allocation0]]
  $region66: #{_fused_mlp_forward.1} parent=0
    _
  %s14 = ssub.s32 1, %s12
  %s15 = scalar_select 0, %s14, %s12
  $region1: #{_fused_mlp_forward.1} parent=0
    #allocation2 [shape = 'u8[65536]{0}', space=vmem, size = 0x10000, scoped, tag = 'input window, operand 1, single buffered']
    #allocation3 [shape = 's32[1]{0}', space=sflag, size = 0x4, scoped, tag = 'scoped memory for _fused_mlp_forward.1']
    #allocation4 [shape = 'u8[65536]{0}', space=vmem, size = 0x10000, scoped, tag = 'input window, operand 5, single buffered']
    #allocation5 [shape = 's32[1]{0}', space=sflag, size = 0x4, scoped, tag = 'scoped memory for _fused_mlp_forward.1']
    #allocation6 [shape = 'u8[65536]{0}', space=vmem, size = 0x10000, scoped, tag = 'input window, operand 9, single buffered']
    %16 = vsyncpa [#allocation3], 0
    %17 = vsyncpa [#allocation5], 0
    // Predicated region
    $region2: #{_fused_mlp_forward.1} parent=1 // pred_check
      _
    $region3: #{_fused_mlp_forward.1} parent=1 // pred_check_branch
      %19 = sbr.rel (0) target = $region5
    $region4: #{_fused_mlp_forward.1} parent=1 // pred_region
      _
    $region5: #{_fused_mlp_forward.1} parent=1 // pred_fallthru
      _
    // Predicated region
    $region6: #{_fused_mlp_forward.1} parent=1 // pred_check
      _
    $region7: #{_fused_mlp_forward.1} parent=1 // pred_check_branch
      %21 = sbr.rel (0) target = $region9
    $region8: #{_fused_mlp_forward.1} parent=1 // pred_region
      %23 = vsyncadd [#allocation3], 0
      %s24 = sshll.u32 %s1, 4
      %s25 = int_to_ptr.hbm [resolvable:$true] %s24
      %s26 = sshll.u32 [#allocation2], 4
      %s27 = int_to_ptr.vmem [resolvable:$true] %s26
      %32 = dma.hbm_to_vmem [thread:$0]  %s25, 2048, %s27, [#allocation3], 128, 128, 8
    $region9: #{_fused_mlp_forward.1} parent=1 // pred_fallthru
      _
    // Predicated region
    $region10: #{_fused_mlp_forward.1} parent=1 // pred_check
      _
    $region11: #{_fused_mlp_forward.1} parent=1 // pred_check_branch
      %34 = sbr.rel (0) target = $region13
    $region12: #{_fused_mlp_forward.1} parent=1 // pred_region
      _
    $region13: #{_fused_mlp_forward.1} parent=1 // pred_fallthru
      _
    // Predicated region
    $region14: #{_fused_mlp_forward.1} parent=1 // pred_check
      _
    $region15: #{_fused_mlp_forward.1} parent=1 // pred_check_branch
      %36 = sbr.rel (0) target = $region17
    $region16: #{_fused_mlp_forward.1} parent=1 // pred_region
      _
    $region17: #{_fused_mlp_forward.1} parent=1 // pred_fallthru
      _
    // Predicated region
    $region18: #{_fused_mlp_forward.1} parent=1 // pred_check
      _
    $region19: #{_fused_mlp_forward.1} parent=1 // pred_check_branch
      %38 = sbr.rel (0) target = $region21
    $region20: #{_fused_mlp_forward.1} parent=1 // pred_region
      _
    $region21: #{_fused_mlp_forward.1} parent=1 // pred_fallthru
      _
    // Predicated region
    $region22: #{_fused_mlp_forward.1} parent=1 // pred_check
      _
    $region23: #{_fused_mlp_forward.1} parent=1 // pred_check_branch
      %40 = sbr.rel (0) target = $region25
    $region24: #{_fused_mlp_forward.1} parent=1 // pred_region
      %42 = vsyncadd [#allocation5], 0
      %s43 = sshll.u32 %s5, 4
      %s44 = int_to_ptr.hbm [resolvable:$true] %s43
      %s45 = sshll.u32 [#allocation4], 4
      %s46 = int_to_ptr.vmem [resolvable:$true] %s45
      %51 = dma.hbm_to_vmem [thread:$0]  %s44, 2048, %s46, [#allocation5], 128, 128, 8
    $region25: #{_fused_mlp_forward.1} parent=1 // pred_fallthru
      _
    // Predicated region
    $region26: #{_fused_mlp_forward.1} parent=1 // pred_check
      _
    $region27: #{_fused_mlp_forward.1} parent=1 // pred_check_branch
      %53 = sbr.rel (0) target = $region29
    $region28: #{_fused_mlp_forward.1} parent=1 // pred_region
      _
    $region29: #{_fused_mlp_forward.1} parent=1 // pred_fallthru
      _
    // Predicated region
    $region30: #{_fused_mlp_forward.1} parent=1 // pred_check
      _
    $region31: #{_fused_mlp_forward.1} parent=1 // pred_check_branch
      %55 = sbr.rel (0) target = $region33
    $region32: #{_fused_mlp_forward.1} parent=1 // pred_region
      _
    $region33: #{_fused_mlp_forward.1} parent=1 // pred_fallthru
      _
    // Predicated region
    $region34: #{_fused_mlp_forward.1} parent=1 // pred_check
      _
    $region35: #{_fused_mlp_forward.1} parent=1 // pred_check_branch
      %57 = sbr.rel (0) target = $region37
    $region36: #{_fused_mlp_forward.1} parent=1 // pred_region
      _
    $region37: #{_fused_mlp_forward.1} parent=1 // pred_fallthru
      _
    // Predicated region
    $region38: #{_fused_mlp_forward.1} parent=1 // pred_check
      _
    $region39: #{_fused_mlp_forward.1} parent=1 // pred_check_branch
      %59 = sbr.rel (0) target = $region41
    $region40: #{_fused_mlp_forward.1} parent=1 // pred_region
      %61 = vsyncadd [#allocation5], 0
      %s62 = sshll.u32 %s9, 4
      %s63 = int_to_ptr.hbm [resolvable:$true] %s62
      %s64 = sshll.u32 [#allocation6], 4
      %s65 = int_to_ptr.vmem [resolvable:$true] %s64
      %70 = dma.hbm_to_vmem [thread:$0]  %s63, 2048, %s65, [#allocation5], 128, 128, 8
    $region41: #{_fused_mlp_forward.1} parent=1 // pred_fallthru
      _
    // Predicated region
    $region42: #{_fused_mlp_forward.1} parent=1 // pred_check
      _
    $region43: #{_fused_mlp_forward.1} parent=1 // pred_check_branch
      %72 = sbr.rel (0) target = $region45
    $region44: #{_fused_mlp_forward.1} parent=1 // pred_region
      _
    $region45: #{_fused_mlp_forward.1} parent=1 // pred_fallthru
      _
    // Predicated region
    $region46: #{_fused_mlp_forward.1} parent=1 // pred_check
      _
    $region47: #{_fused_mlp_forward.1} parent=1 // pred_check_branch
      %74 = sbr.rel (0) target = $region49
    $region48: #{_fused_mlp_forward.1} parent=1 // pred_region
      %76 = dma.done [#allocation3], 2048
    $region49: #{_fused_mlp_forward.1} parent=1 // pred_fallthru
      _
    // Predicated region
    $region50: #{_fused_mlp_forward.1} parent=1 // pred_check
      _
    $region51: #{_fused_mlp_forward.1} parent=1 // pred_check_branch
      %78 = sbr.rel (0) target = $region53
    $region52: #{_fused_mlp_forward.1} parent=1 // pred_region
      %80 = dma.done [#allocation5], 2048
    $region53: #{_fused_mlp_forward.1} parent=1 // pred_fallthru
      _
    // Predicated region
    $region54: #{_fused_mlp_forward.1} parent=1 // pred_check
      _
    $region55: #{_fused_mlp_forward.1} parent=1 // pred_check_branch
      %82 = sbr.rel (0) target = $region57
    $region56: #{_fused_mlp_forward.1} parent=1 // pred_region
      %84 = dma.done [#allocation5], 2048
    $region57: #{_fused_mlp_forward.1} parent=1 // pred_fallthru
      _
    %v85 = vld [vmem:[%s0] sm:$0xff]
    %v86 = vld [vmem:[%s0 + $0x8] sm:$0xff]
    %v87 = vld [vmem:[#allocation2] sm:$0xff]
    %v88 = vld [vmem:[#allocation2 + $0x8] sm:$0xff]
    %v89 = vld [vmem:[#allocation2 + $0x10] sm:$0xff]
    %v90 = vld [vmem:[#allocation2 + $0x18] sm:$0xff]
    %v91 = vld [vmem:[#allocation2 + $0x20] sm:$0xff]
    %v92 = vld [vmem:[#allocation2 + $0x28] sm:$0xff]
    %v93 = vld [vmem:[#allocation2 + $0x30] sm:$0xff]
    %v94 = vld [vmem:[#allocation2 + $0x38] sm:$0xff]
    %v95 = vld [vmem:[#allocation2 + $0x40] sm:$0xff]
    %v96 = vld [vmem:[#allocation2 + $0x48] sm:$0xff]
    %v97 = vld [vmem:[#allocation2 + $0x50] sm:$0xff]
    %v98 = vld [vmem:[#allocation2 + $0x58] sm:$0xff]
    %v99 = vld [vmem:[#allocation2 + $0x60] sm:$0xff]
    %v100 = vld [vmem:[#allocation2 + $0x68] sm:$0xff]
    %v101 = vld [vmem:[#allocation2 + $0x70] sm:$0xff]
    %v102 = vld [vmem:[#allocation2 + $0x78] sm:$0xff]
    %v103 = vld [vmem:[%s2] sm:$0x1]
    %v105 = vperm.slane %v103, 0
    %107 = vmatpush.msra.mxu0 %v102
    %108 = vmatpush.msra.mxu0 %v101
    %109 = vmatpush.msra.mxu0 %v100
    %110 = vmatpush.msra.mxu0 %v99
    %111 = vmatpush.msra.mxu0 %v98
    %112 = vmatpush.msra.mxu0 %v97
    %113 = vmatpush.msra.mxu0 %v96
    %114 = vmatpush.msra.mxu0 %v95
    %115 = vmatpush.msra.mxu0 %v94
    %116 = vmatpush.msra.mxu0 %v93
    %117 = vmatpush.msra.mxu0 %v92
    %118 = vmatpush.msra.mxu0 %v91
    %119 = vmatpush.msra.mxu0 %v90
    %120 = vmatpush.msra.mxu0 %v89
    %121 = vmatpush.msra.mxu0 %v88
    %122 = vmatpush.msra.mxu0 %v87
    %123 = vmatmul.f32.gmra.mxu0 %v85
    %v124 = vpop.f32.mrf.mxu0
    %v125 = vadd.f32 %v105, %v124
    %126 = vmatmul.f32.gmra.mxu0 %v86
    %v127 = vpop.f32.mrf.mxu0
    %v128 = vadd.f32 %v105, %v127
    %129 = vdwg.mxu0
    %v130 = vmax.f32 %v125, 0.0
    %v131 = vmax.f32 %v128, 0.0
    %v132 = vadd.f32 %v130, %v131
    %v133 = vrot.slane %v132, 4
    %v134 = vadd.f32 %v132, %v133
    %v135 = vrot.slane %v134, 2
    %v136 = vadd.f32 %v134, %v135
    %v137 = vrot.slane %v136, 1
    %v138 = vadd.f32 %v136, %v137
    %v139 = vmul.f32 %v138, 0.0625
    %v140 = vsub.f32 %v130, %v139
    %v141 = vsub.f32 %v131, %v139
    %v142 = vmul.f32 %v140, %v140
    %v143 = vmul.f32 %v141, %v141
    %v144 = vadd.f32 %v142, %v143
    %v145 = vrot.slane %v144, 4
    %v146 = vadd.f32 %v144, %v145
    %v147 = vrot.slane %v146, 2
    %v148 = vadd.f32 %v146, %v147
    %v149 = vrot.slane %v148, 1
    %v150 = vadd.f32 %v148, %v149
    %v151 = vmul.f32 %v150, 0.0625
    %v152 = vld [vmem:[%s3] sm:$0x1]
    %v153 = vadd.f32 %v151, 1e-05
    %v154 = vrsqrt.pop %v153
    %v155 = vmul.f32 %v154, %v153
    %v156 = vmul.f32 %v155, %v154
    %v157 = vmul.f32 0.5, %v156
    %v158 = vsub.f32 1.5, %v157
    %v159 = vmul.f32 %v154, %v158
    %vm160 = vweird.f32 %v153
    %vm161 = vweird.f32 %v154
    %vm162 = vmor %vm160, %vm161
    %v163 = vsel %vm162, %v154, %v159
    %v164 = vmul.f32 %v152, %v163
    %v165 = vld [vmem:[%s4] sm:$0x1]
    %v166 = vmul.f32 %v139, %v164
    %v167 = vsub.f32 %v165, %v166
    %v169 = vperm.slane %v164, 0
    %v171 = vmul.f32 %v130, %v169
    %v172 = vmul.f32 %v131, %v169
    %v174 = vperm.slane %v167, 0
    %v176 = vadd.f32 %v171, %v174
    %v177 = vadd.f32 %v172, %v174
    %v178 = vld [vmem:[#allocation4] sm:$0xff]
    %v179 = vld [vmem:[#allocation4 + $0x8] sm:$0xff]
    %v180 = vld [vmem:[#allocation4 + $0x10] sm:$0xff]
    %v181 = vld [vmem:[#allocation4 + $0x18] sm:$0xff]
    %v182 = vld [vmem:[#allocation4 + $0x20] sm:$0xff]
    %v183 = vld [vmem:[#allocation4 + $0x28] sm:$0xff]
    %v184 = vld [vmem:[#allocation4 + $0x30] sm:$0xff]
    %v185 = vld [vmem:[#allocation4 + $0x38] sm:$0xff]
    %v186 = vld [vmem:[#allocation4 + $0x40] sm:$0xff]
    %v187 = vld [vmem:[#allocation4 + $0x48] sm:$0xff]
    %v188 = vld [vmem:[#allocation4 + $0x50] sm:$0xff]
    %v189 = vld [vmem:[#allocation4 + $0x58] sm:$0xff]
    %v190 = vld [vmem:[#allocation4 + $0x60] sm:$0xff]
    %v191 = vld [vmem:[#allocation4 + $0x68] sm:$0xff]
    %v192 = vld [vmem:[#allocation4 + $0x70] sm:$0xff]
    %v193 = vld [vmem:[#allocation4 + $0x78] sm:$0xff]
    %v194 = vld [vmem:[%s6] sm:$0x1]
    %v196 = vperm.slane %v194, 0
    %198 = vmatpush.msra.mxu0 %v193
    %199 = vmatpush.msra.mxu0 %v192
    %200 = vmatpush.msra.mxu0 %v191
    %201 = vmatpush.msra.mxu0 %v190
    %202 = vmatpush.msra.mxu0 %v189
    %203 = vmatpush.msra.mxu0 %v188
    %204 = vmatpush.msra.mxu0 %v187
    %205 = vmatpush.msra.mxu0 %v186
    %206 = vmatpush.msra.mxu0 %v185
    %207 = vmatpush.msra.mxu0 %v184
    %208 = vmatpush.msra.mxu0 %v183
    %209 = vmatpush.msra.mxu0 %v182
    %210 = vmatpush.msra.mxu0 %v181
    %211 = vmatpush.msra.mxu0 %v180
    %212 = vmatpush.msra.mxu0 %v179
    %213 = vmatpush.msra.mxu0 %v178
    %214 = vmatmul.f32.gmra.mxu0 %v176
    %v215 = vpop.f32.mrf.mxu0
    %v216 = vadd.f32 %v196, %v215
    %217 = vmatmul.f32.gmra.mxu0 %v177
    %v218 = vpop.f32.mrf.mxu0
    %v219 = vadd.f32 %v196, %v218
    %220 = vdwg.mxu0
    %v221 = vmax.f32 %v216, 0.0
    %v222 = vmax.f32 %v219, 0.0
    %v223 = vadd.f32 %v221, %v222
    %v224 = vrot.slane %v223, 4
    %v225 = vadd.f32 %v223, %v224
    %v226 = vrot.slane %v225, 2
    %v227 = vadd.f32 %v225, %v226
    %v228 = vrot.slane %v227, 1
    %v229 = vadd.f32 %v227, %v228
    %v230 = vmul.f32 %v229, 0.0625
    %v231 = vsub.f32 %v221, %v230
    %v232 = vsub.f32 %v222, %v230
    %v233 = vmul.f32 %v231, %v231
    %v234 = vmul.f32 %v232, %v232
    %v235 = vadd.f32 %v233, %v234
    %v236 = vrot.slane %v235, 4
    %v237 = vadd.f32 %v235, %v236
    %v238 = vrot.slane %v237, 2
    %v239 = vadd.f32 %v237, %v238
    %v240 = vrot.slane %v239, 1
    %v241 = vadd.f32 %v239, %v240
    %v242 = vmul.f32 %v241, 0.0625
    %v243 = vld [vmem:[%s7] sm:$0x1]
    %v244 = vadd.f32 %v242, 1e-05
    %v245 = vrsqrt.pop %v244
    %v246 = vmul.f32 %v245, %v244
    %v247 = vmul.f32 %v246, %v245
    %v248 = vmul.f32 0.5, %v247
    %v249 = vsub.f32 1.5, %v248
    %v250 = vmul.f32 %v245, %v249
    %vm251 = vweird.f32 %v244
    %vm252 = vweird.f32 %v245
    %vm253 = vmor %vm251, %vm252
    %v254 = vsel %vm253, %v245, %v250
    %v255 = vmul.f32 %v243, %v254
    %v256 = vld [vmem:[%s8] sm:$0x1]
    %v257 = vmul.f32 %v230, %v255
    %v258 = vsub.f32 %v256, %v257
    %v260 = vperm.slane %v255, 0
    %v262 = vmul.f32 %v221, %v260
    %v263 = vmul.f32 %v222, %v260
    %v265 = vperm.slane %v258, 0
    %v267 = vadd.f32 %v262, %v265
    %v268 = vadd.f32 %v263, %v265
    %v269 = vld [vmem:[#allocation6] sm:$0xff]
    %v270 = vld [vmem:[#allocation6 + $0x8] sm:$0xff]
    %v271 = vld [vmem:[#allocation6 + $0x10] sm:$0xff]
    %v272 = vld [vmem:[#allocation6 + $0x18] sm:$0xff]
    %v273 = vld [vmem:[#allocation6 + $0x20] sm:$0xff]
    %v274 = vld [vmem:[#allocation6 + $0x28] sm:$0xff]
    %v275 = vld [vmem:[#allocation6 + $0x30] sm:$0xff]
    %v276 = vld [vmem:[#allocation6 + $0x38] sm:$0xff]
    %v277 = vld [vmem:[#allocation6 + $0x40] sm:$0xff]
    %v278 = vld [vmem:[#allocation6 + $0x48] sm:$0xff]
    %v279 = vld [vmem:[#allocation6 + $0x50] sm:$0xff]
    %v280 = vld [vmem:[#allocation6 + $0x58] sm:$0xff]
    %v281 = vld [vmem:[#allocation6 + $0x60] sm:$0xff]
    %v282 = vld [vmem:[#allocation6 + $0x68] sm:$0xff]
    %v283 = vld [vmem:[#allocation6 + $0x70] sm:$0xff]
    %v284 = vld [vmem:[#allocation6 + $0x78] sm:$0xff]
    %v285 = vld [vmem:[%s10] sm:$0x1]
    %v287 = vperm.slane %v285, 0
    %289 = vmatpush.msra.mxu0 %v284
    %290 = vmatpush.msra.mxu0 %v283
    %291 = vmatpush.msra.mxu0 %v282
    %292 = vmatpush.msra.mxu0 %v281
    %293 = vmatpush.msra.mxu0 %v280
    %294 = vmatpush.msra.mxu0 %v279
    %295 = vmatpush.msra.mxu0 %v278
    %296 = vmatpush.msra.mxu0 %v277
    %297 = vmatpush.msra.mxu0 %v276
    %298 = vmatpush.msra.mxu0 %v275
    %299 = vmatpush.msra.mxu0 %v274
    %300 = vmatpush.msra.mxu0 %v273
    %301 = vmatpush.msra.mxu0 %v272
    %302 = vmatpush.msra.mxu0 %v271
    %303 = vmatpush.msra.mxu0 %v270
    %304 = vmatpush.msra.mxu0 %v269
    %305 = vmatmul.f32.gmra.mxu0 %v267
    %v306 = vpop.f32.mrf.mxu0
    %v307 = vadd.f32 %v287, %v306
    %308 = vmatmul.f32.gmra.mxu0 %v268
    %v309 = vpop.f32.mrf.mxu0
    %v310 = vadd.f32 %v287, %v309
    %311 = vdwg.mxu0
    %v312 = vmax.f32 %v307, 0.0
    %v313 = vmax.f32 %v310, 0.0
    %314 = vst [vmem:[%s11] sm:$0xff] %v312
    %315 = vst [vmem:[%s11 + $0x8] sm:$0xff] %v313
    // Predicated region
    $region58: #{_fused_mlp_forward.1} parent=1 // pred_check
      _
    $region59: #{_fused_mlp_forward.1} parent=1 // pred_check_branch
      %317 = sbr.rel (0) target = $region61
    $region60: #{_fused_mlp_forward.1} parent=1 // pred_region
      _
    $region61: #{_fused_mlp_forward.1} parent=1 // pred_fallthru
      _
    // Predicated region
    $region62: #{_fused_mlp_forward.1} parent=1 // pred_check
      _
    $region63: #{_fused_mlp_forward.1} parent=1 // pred_check_branch
      %319 = sbr.rel (0) target = $region65
    $region64: #{_fused_mlp_forward.1} parent=1 // pred_region
      _
    $region65: #{_fused_mlp_forward.1} parent=1 // pred_fallthru
      _
    %320 = vsyncpa [#allocation3], 1
    %321 = vsyncpa [#allocation5], 1

</llo_original>
